<compile_context>
chip_gen: v6e
topology: v6e:2x2x1
jax: 0.10.0
libtpu: 0.0.40
codegen_flags: <defaults>
</compile_context>

<pallas_src>
import jax
import jax.numpy as jnp
from jax import lax
from jax.experimental import pallas as pl
from jax.experimental.pallas import tpu as pltpu


_LANE = 128     # lane width: pad the (resident) hidden dim to a multiple of this
_SUBLANE = 8    # f32 sublane width: batch tile is a multiple of this


def _round_up(n, m):
    return (n + m - 1) // m * m


def contrastor_kernel(x_ref, w1t_ref, b1_ref, w2t_ref, b2_ref, o_ref):
    # x_ref:   (TB, n_in)         VMEM   (streams per grid step, native width)
    # w1t_ref: (n_in, hid_p)      VMEM   (resident: index_map == (0,0) every step)
    # b1_ref:  (1, hid_p)  f32    VMEM   (resident)
    # w2t_ref: (hid_p, n_out)     VMEM   (resident)
    # b2_ref:  (1, n_out)  f32    VMEM   (resident)
    # o_ref:   (TB, n_out)        VMEM   (streams per grid step, native width)
    x = x_ref[...].astype(w1t_ref.dtype)

    # hidden = relu(x @ W1.T + b1)   -- MXU matmul, f32 accumulation.
    # Padded hidden lanes have zero weight columns and zero bias -> relu(0) = 0.
    h = jnp.dot(x, w1t_ref[...], preferred_element_type=jnp.float32)
    h = jnp.maximum(h + b1_ref[...], 0.0)

    # y = hidden @ W2.T + b2   (padded hidden lanes are zero -> no contribution)
    y = jnp.dot(h.astype(w2t_ref.dtype), w2t_ref[...],
                preferred_element_type=jnp.float32)
    y = y + b2_ref[...]

    # F.normalize(dim=-1, eps=1e-12): output is native width, so the sum of
    # squares spans exactly n_out lanes.  y * rsqrt(max(ss, eps^2)) == y / max(||y||, eps).
    ss = jnp.sum(y * y, axis=-1, keepdims=True)
    inv = lax.rsqrt(jnp.maximum(ss, 1e-24))
    o_ref[...] = (y * inv).astype(o_ref.dtype)


def prepare_contrastor_params(w1, b1, w2, b2, param_dtype=jnp.float32):
    """One-time parameter preparation (do NOT run per forward call).

    Takes PyTorch-layout parameters (weight (out, in), bias (out,)), transposes the
    weights to (in, out) and zero-pads only the HIDDEN dim to a multiple of 128
    lanes (the streamed x / output keep their native widths).  Biases stay f32.
    Use param_dtype=jnp.bfloat16 on v6e/v7x for MXU/bandwidth; f32 accumulation and
    f32 elementwise math are kept inside the kernel.
    """
    n_in = w1.shape[1]
    n_hid = w1.shape[0]           # == n_in in the module
    n_out = w2.shape[0]
    hid_p = _round_up(n_hid, _LANE)

    w1t = jnp.zeros((n_in, hid_p), param_dtype)
    w1t = w1t.at[:, :n_hid].set(jnp.transpose(w1).astype(param_dtype))
    w2t = jnp.zeros((hid_p, n_out), param_dtype)
    w2t = w2t.at[:n_hid, :].set(jnp.transpose(w2).astype(param_dtype))
    b1p = jnp.zeros((1, hid_p), jnp.float32).at[0, :n_hid].set(b1.astype(jnp.float32))
    b2p = b2.astype(jnp.float32).reshape(1, n_out)
    return {"w1t": w1t, "b1": b1p, "w2t": w2t, "b2": b2p,
            "n_in": n_in, "n_out": n_out}


def contrastor_forward_prepared(x, params, *, tile_batch=2048, out_dtype=None):
    """Forward with pre-prepared (transposed + hidden-padded) parameters.

    x is streamed at native width; set out_dtype=jnp.bfloat16 (and bf16 params + a
    bf16 x) on v6e/v7x to halve streamed HBM bytes.
    """
    B, n_in = x.shape
    assert n_in == params["n_in"]
    w1t, b1p, w2t, b2p = params["w1t"], params["b1"], params["w2t"], params["b2"]
    n_out = params["n_out"]
    hid_p = w1t.shape[1]
    out_dtype = jnp.float32 if out_dtype is None else out_dtype

    # Batch tile: multiple of 8 sublanes, capped at `tile_batch` rows, and also
    # capped at ~ceil(B/2) so the batch grid has >= 2 steps whenever B allows it
    # (v7x megacore: both TensorCores get work).  No batch padding is materialized;
    # Pallas masks the partial edge block (rows are independent, so garbage rows in
    # the last input block cannot affect valid rows and their stores are dropped).
    tb = max(_SUBLANE, min(int(tile_batch), _round_up(pl.cdiv(B, 2), _SUBLANE)))
    grid = (pl.cdiv(B, tb),)

    out = pl.pallas_call(
        contrastor_kernel,
        out_shape=jax.ShapeDtypeStruct((B, n_out), out_dtype),
        grid=grid,
        in_specs=[
            pl.BlockSpec((tb, n_in), lambda i: (i, 0)),        # x: streams, native width
            pl.BlockSpec((n_in, hid_p), lambda i: (0, 0)),     # W1.T: resident (DMA'd once)
            pl.BlockSpec((1, hid_p), lambda i: (0, 0)),        # b1:   resident
            pl.BlockSpec((hid_p, n_out), lambda i: (0, 0)),    # W2.T: resident
            pl.BlockSpec((1, n_out), lambda i: (0, 0)),        # b2:   resident
        ],
        out_specs=pl.BlockSpec((tb, n_out), lambda i: (i, 0)), # out: streams, native width
        compiler_params=pltpu.CompilerParams(
            dimension_semantics=("parallel",),   # v7x: shard batch tiles over both TCs
        ),
    )(x, w1t, b1p, w2t, b2p)

    return out


def contrastor_forward(x, w1, b1, w2, b2, *, tile_batch=2048,
                       param_dtype=jnp.float32, out_dtype=None):
    """Convenience wrapper (preps params then runs).  For repeated calls with the
    same weights, call prepare_contrastor_params once and reuse it."""
    params = prepare_contrastor_params(w1, b1, w2, b2, param_dtype=param_dtype)
    return contrastor_forward_prepared(x, params, tile_batch=tile_batch,
                                       out_dtype=out_dtype)


def _reference(x, w1, b1, w2, b2):
    h = jnp.maximum(x @ w1.T + b1, 0.0)
    y = h @ w2.T + b2
    n = jnp.sqrt(jnp.sum(y * y, axis=1, keepdims=True))
    return y / jnp.maximum(n, 1e-12)


if __name__ == "__main__":
    # Shapes consistent with the module: n_inputs=32, n_outputs=16.
    n_in, n_out = 32, 16

    key = jax.random.PRNGKey(0)
    kx, kw1, kb1, kw2, kb2, kx2, kx3 = jax.random.split(key, 7)

    # PyTorch Linear layouts: weight (out, in), bias (out,)
    w1 = jax.random.normal(kw1, (n_in, n_in), dtype=jnp.float32) * 0.1
    b1 = jax.random.normal(kb1, (n_in,), dtype=jnp.float32) * 0.1
    w2 = jax.random.normal(kw2, (n_out, n_in), dtype=jnp.float32) * 0.1
    b2 = jax.random.normal(kb2, (n_out,), dtype=jnp.float32) * 0.1

    params = prepare_contrastor_params(w1, b1, w2, b2)  # one-time prep (f32)

    # Case 1: tiny batch (single grid step, native-width streams).
    B1 = 8
    x1 = jax.random.normal(kx, (B1, n_in), dtype=jnp.float32)
    out1 = jax.block_until_ready(contrastor_forward_prepared(x1, params))
    ref1 = _reference(x1, w1, b1, w2, b2)
    assert out1.shape == (B1, n_out)
    assert jnp.allclose(out1, ref1, atol=1e-5, rtol=1e-5)

    # Case 2: ragged batch with a small tile -> multi-step grid + masked partial
    # edge block (no wrapper-side pad/slice copies).
    B2 = 50
    x2 = jax.random.normal(kx2, (B2, n_in), dtype=jnp.float32)
    out2 = jax.block_until_ready(
        contrastor_forward_prepared(x2, params, tile_batch=32))
    ref2 = _reference(x2, w1, b1, w2, b2)
    assert out2.shape == (B2, n_out)
    assert jnp.allclose(out2, ref2, atol=1e-5, rtol=1e-5)

    # Case 3: bf16 weight/compute streaming path (v6e/v7x bandwidth option),
    # f32 accumulation + f32 elementwise kept inside the kernel.
    B3 = 64
    x3 = jax.random.normal(kx3, (B3, n_in), dtype=jnp.float32)
    params_bf16 = prepare_contrastor_params(w1, b1, w2, b2,
                                            param_dtype=jnp.bfloat16)
    out3 = jax.block_until_ready(
        contrastor_forward_prepared(x3.astype(jnp.bfloat16), params_bf16))
    ref3 = _reference(x3, w1, b1, w2, b2)
    assert out3.shape == (B3, n_out)
    assert jnp.allclose(out3, ref3, atol=3e-2, rtol=3e-2)  # bf16 tolerance

    print("KERNEL_OK")
</pallas_src>

<mosaic_0001>
module attributes {stable_mosaic.version = 11 : i64} {
  func.func @contrastor_kernel(%arg0: i32, %arg1: memref<8x32xf32, #tpu.memory_space<vmem>>, %arg2: memref<32x128xf32, #tpu.memory_space<vmem>>, %arg3: memref<1x128xf32, #tpu.memory_space<vmem>>, %arg4: memref<128x16xf32, #tpu.memory_space<vmem>>, %arg5: memref<1x16xf32, #tpu.memory_space<vmem>>, %arg6: memref<8x16xf32, #tpu.memory_space<vmem>>) attributes {dimension_semantics = [#tpu.dimension_semantics<parallel>], iteration_bounds = array<i64: 1>, scalar_prefetch = 0 : i64, scratch_operands = 0 : i64, tpu.core_type = #tpu.core_type<tc>, window_params = [{transform_indices = @transform_0, window_bounds = array<i64: 8, 32>}, {pipeline_mode = #tpu.pipeline_mode<synchronous>, transform_indices = @transform_1, window_bounds = array<i64: 32, 128>}, {pipeline_mode = #tpu.pipeline_mode<synchronous>, transform_indices = @transform_2, window_bounds = array<i64: 1, 128>}, {pipeline_mode = #tpu.pipeline_mode<synchronous>, transform_indices = @transform_3, window_bounds = array<i64: 128, 16>}, {pipeline_mode = #tpu.pipeline_mode<synchronous>, transform_indices = @transform_4, window_bounds = array<i64: 1, 16>}, {transform_indices = @transform_5, window_bounds = array<i64: 8, 16>}]} {
    %c0 = arith.constant 0 : index
    %c0_0 = arith.constant 0 : index
    %0 = vector.load %arg1[%c0, %c0_0] : memref<8x32xf32, #tpu.memory_space<vmem>>, vector<8x32xf32>
    %c0_1 = arith.constant 0 : index
    %c0_2 = arith.constant 0 : index
    %1 = vector.load %arg2[%c0_1, %c0_2] : memref<32x128xf32, #tpu.memory_space<vmem>>, vector<32x128xf32>
    %cst = arith.constant dense<0.000000e+00> : vector<8x128xf32>
    %2 = tpu.matmul %0, %1, %cst {dimension_numbers = #tpu.dot_dimension_numbers<[1], [0], [0], [1], [0, 0, 1, 1], [], []>} : vector<8x32xf32>, vector<32x128xf32>, vector<8x128xf32> -> vector<8x128xf32>
    %c0_3 = arith.constant 0 : index
    %c0_4 = arith.constant 0 : index
    %3 = vector.load %arg3[%c0_3, %c0_4] : memref<1x128xf32, #tpu.memory_space<vmem>>, vector<1x128xf32>
    %4 = vector.broadcast %3 : vector<1x128xf32> to vector<8x128xf32>
    %5 = arith.addf %2, %4 : vector<8x128xf32>
    %cst_5 = arith.constant 0.000000e+00 : f32
    %6 = vector.broadcast %cst_5 : f32 to vector<8x128xf32>
    %7 = arith.maximumf %5, %6 : vector<8x128xf32>
    %c0_6 = arith.constant 0 : index
    %c0_7 = arith.constant 0 : index
    %8 = vector.load %arg4[%c0_6, %c0_7] : memref<128x16xf32, #tpu.memory_space<vmem>>, vector<128x16xf32>
    %cst_8 = arith.constant dense<0.000000e+00> : vector<8x16xf32>
    %9 = tpu.matmul %7, %8, %cst_8 {dimension_numbers = #tpu.dot_dimension_numbers<[1], [0], [0], [1], [0, 0, 1, 1], [], []>} : vector<8x128xf32>, vector<128x16xf32>, vector<8x16xf32> -> vector<8x16xf32>
    %c0_9 = arith.constant 0 : index
    %c0_10 = arith.constant 0 : index
    %10 = vector.load %arg5[%c0_9, %c0_10] : memref<1x16xf32, #tpu.memory_space<vmem>>, vector<1x16xf32>
    %11 = vector.broadcast %10 : vector<1x16xf32> to vector<8x16xf32>
    %12 = arith.addf %9, %11 : vector<8x16xf32>
    %13 = arith.mulf %12, %12 : vector<8x16xf32>
    %cst_11 = arith.constant dense<0.000000e+00> : vector<8xf32>
    %14 = vector.multi_reduction <add>, %13, %cst_11 [1] : vector<8x16xf32> to vector<8xf32>
    %15 = vector.shape_cast %14 : vector<8xf32> to vector<8x1xf32>
    %cst_12 = arith.constant 1.000000e-24 : f32
    %16 = vector.broadcast %cst_12 : f32 to vector<8x1xf32>
    %17 = arith.maximumf %15, %16 : vector<8x1xf32>
    %18 = math.rsqrt %17 : vector<8x1xf32>
    %19 = vector.broadcast %18 : vector<8x1xf32> to vector<8x16xf32>
    %20 = arith.mulf %12, %19 : vector<8x16xf32>
    %c0_13 = arith.constant 0 : index
    %c0_14 = arith.constant 0 : index
    %21 = vector.load %arg6[%c0_13, %c0_14] : memref<8x16xf32, #tpu.memory_space<vmem>>, vector<8x16xf32>
    tpu.vector_store %arg6[%c0_13, %c0_14], %20 {strides = array<i32>} : memref<8x16xf32, #tpu.memory_space<vmem>>, vector<8x16xf32>,
    return
  }
  func.func @transform_0(%arg0: i32) -> (i32, i32) {
    %c0_i32 = arith.constant 0 : i32
    %c0_i32_0 = arith.constant 0 : i32
    return %arg0, %c0_i32 : i32, i32
  }
  func.func @transform_1(%arg0: i32) -> (i32, i32) {
    %c0_i32 = arith.constant 0 : i32
    %c0_i32_0 = arith.constant 0 : i32
    %c0_i32_1 = arith.constant 0 : i32
    return %c0_i32, %c0_i32_0 : i32, i32
  }
  func.func @transform_2(%arg0: i32) -> (i32, i32) {
    %c0_i32 = arith.constant 0 : i32
    %c0_i32_0 = arith.constant 0 : i32
    %c0_i32_1 = arith.constant 0 : i32
    return %c0_i32, %c0_i32_0 : i32, i32
  }
  func.func @transform_3(%arg0: i32) -> (i32, i32) {
    %c0_i32 = arith.constant 0 : i32
    %c0_i32_0 = arith.constant 0 : i32
    %c0_i32_1 = arith.constant 0 : i32
    return %c0_i32, %c0_i32_0 : i32, i32
  }
  func.func @transform_4(%arg0: i32) -> (i32, i32) {
    %c0_i32 = arith.constant 0 : i32
    %c0_i32_0 = arith.constant 0 : i32
    %c0_i32_1 = arith.constant 0 : i32
    return %c0_i32, %c0_i32_0 : i32, i32
  }
  func.func @transform_5(%arg0: i32) -> (i32, i32) {
    %c0_i32 = arith.constant 0 : i32
    %c0_i32_0 = arith.constant 0 : i32
    return %arg0, %c0_i32 : i32, i32
  }
}

</mosaic_0001>

<llo_original>
// kernel: tpu_custom_call.1
$region0: #{tpu_custom_call.1}
  #allocation0 [shape = 'u32[]', space=smem, size = 0x4, offset = 0x4, fixed_abs, tag = 'smem constant byte address 0x4 - core index']
  #allocation1 [shape = 'u32[144,128]{1,0:T(1,128)}', space=vmem, size = 0x12000, scoped, tag = 'internal scratch']
  %s0 = inlined_call_operand.vmem [shape: f32[8,32], index: 0, kind: input, shape index: {}]
  %s1 = inlined_call_operand.vmem [shape: f32[32,128], index: 1, kind: input, shape index: {}]
  %s2 = inlined_call_operand.vmem [shape: f32[1,128], index: 2, kind: input, shape index: {}]
  %s3 = inlined_call_operand.vmem [shape: f32[128,16], index: 3, kind: input, shape index: {}]
  %s4 = inlined_call_operand.vmem [shape: f32[1,16], index: 4, kind: input, shape index: {}]
  %s5 = inlined_call_operand.hbm [shape: f32[8,16], index: 5, kind: output, shape index: {}]
  %s6 = sld [smem:[#allocation0]]
  $region30: #{tpu_custom_call.1} parent=0
    _
  %s8 = ssub.s32 1, %s6
  %s9 = scalar_select 0, %s8, %s6
  $region1: #{tpu_custom_call.1} parent=0
    #allocation2 [shape = 'u8[4096]{0}', space=vmem, size = 0x1000, scoped, tag = 'output window, operand 0, single buffered']
    #allocation3 [shape = 's32[1]{0}', space=sflag, size = 0x4, scoped, tag = 'scoped memory for tpu_custom_call.1']
    %10 = vsyncpa [#allocation3], 0
    // Predicated region
    $region2: #{tpu_custom_call.1} parent=1 // pred_check
      _
    $region3: #{tpu_custom_call.1} parent=1 // pred_check_branch
      %12 = sbr.rel (0) target = $region5
    $region4: #{tpu_custom_call.1} parent=1 // pred_region
      _
    $region5: #{tpu_custom_call.1} parent=1 // pred_fallthru
      _
    // Predicated region
    $region6: #{tpu_custom_call.1} parent=1 // pred_check
      _
    $region7: #{tpu_custom_call.1} parent=1 // pred_check_branch
      %14 = sbr.rel (0) target = $region9
    $region8: #{tpu_custom_call.1} parent=1 // pred_region
      _
    $region9: #{tpu_custom_call.1} parent=1 // pred_fallthru
      _
    // Predicated region
    $region10: #{tpu_custom_call.1} parent=1 // pred_check
      _
    $region11: #{tpu_custom_call.1} parent=1 // pred_check_branch
      %16 = sbr.rel (0) target = $region13
    $region12: #{tpu_custom_call.1} parent=1 // pred_region
      _
    $region13: #{tpu_custom_call.1} parent=1 // pred_fallthru
      _
    // Predicated region
    $region14: #{tpu_custom_call.1} parent=1 // pred_check
      _
    $region15: #{tpu_custom_call.1} parent=1 // pred_check_branch
      %18 = sbr.rel (0) target = $region17
    $region16: #{tpu_custom_call.1} parent=1 // pred_region
      _
    $region17: #{tpu_custom_call.1} parent=1 // pred_fallthru
      _
    // Predicated region
    $region18: #{tpu_custom_call.1} parent=1 // pred_check
      _
    $region19: #{tpu_custom_call.1} parent=1 // pred_check_branch
      %20 = sbr.rel (0) target = $region21
    $region20: #{tpu_custom_call.1} parent=1 // pred_region
      _
    $region21: #{tpu_custom_call.1} parent=1 // pred_fallthru
      _
    %v21 = vld [vmem:[%s0] sm:$0xff]
    %v22 = vld [vmem:[%s1] sm:$0xff]
    %v23 = vld [vmem:[%s1 + $0x8] sm:$0xff]
    %v24 = vld [vmem:[%s1 + $0x10] sm:$0xff]
    %v25 = vld [vmem:[%s1 + $0x18] sm:$0xff]
    %v26 = vld [vmem:[%s2] sm:$0x1]
    %v28 = vlaneseq
    %v29 = vshrl.u32 %v28, 7
    %v30 = vsub.s32 0, %v29
    %v31 = vrot.slane %v26, %v30
    %vm33 = vcmask 261120
    %v35 = vsel %vm33, %v21, 0
    %37 = vmatprep.subr.mxu0 0.0
    %38 = vmatpush1.msra.mxu0 0.0
    %39 = vmatprep.subr.mxu0 0.0
    %40 = vmatpush1.msra.mxu0 0.0
    %41 = vmatprep.subr.mxu0 0.0
    %42 = vmatpush1.msra.mxu0 0.0
    %43 = vmatprep.subr.mxu0 0.0
    %44 = vmatpush1.msra.mxu0 0.0
    %45 = vmatprep.subr.mxu0 0.0
    %46 = vmatpush1.msra.mxu0 0.0
    %47 = vmatprep.subr.mxu0 0.0
    %48 = vmatpush1.msra.mxu0 0.0
    %49 = vmatprep.subr.mxu0 0.0
    %50 = vmatpush1.msra.mxu0 0.0
    %51 = vmatprep.subr.mxu0 0.0
    %52 = vmatpush1.msra.mxu0 0.0
    %53 = vmatprep.subr.mxu0 0.0
    %54 = vmatpush1.msra.mxu0 0.0
    %55 = vmatprep.subr.mxu0 0.0
    %56 = vmatpush1.msra.mxu0 0.0
    %57 = vmatprep.subr.mxu0 0.0
    %58 = vmatpush1.msra.mxu0 0.0
    %59 = vmatprep.subr.mxu0 0.0
    %60 = vmatpush1.msra.mxu0 0.0
    %61 = vmatprep.subr.mxu0 0.0
    %62 = vmatpush1.msra.mxu0 %v25
    %63 = vmatprep.subr.mxu0 0.0
    %64 = vmatpush1.msra.mxu0 %v24
    %65 = vmatprep.subr.mxu0 0.0
    %66 = vmatpush1.msra.mxu0 %v23
    %67 = vmatprep.subr.mxu0 0.0
    %68 = vmatpush1.msra.mxu0 %v22
    %69 = vmatprep.subr.mxu0 0.0
    %70 = vmatpush2.msra.mxu0 0.0
    %71 = vmatprep.subr.mxu0 0.0
    %72 = vmatpush2.msra.mxu0 0.0
    %73 = vmatprep.subr.mxu0 0.0
    %74 = vmatpush2.msra.mxu0 0.0
    %75 = vmatprep.subr.mxu0 0.0
    %76 = vmatpush2.msra.mxu0 0.0
    %77 = vmatprep.subr.mxu0 0.0
    %78 = vmatpush2.msra.mxu0 0.0
    %79 = vmatprep.subr.mxu0 0.0
    %80 = vmatpush2.msra.mxu0 0.0
    %81 = vmatprep.subr.mxu0 0.0
    %82 = vmatpush2.msra.mxu0 0.0
    %83 = vmatprep.subr.mxu0 0.0
    %84 = vmatpush2.msra.mxu0 0.0
    %85 = vmatprep.subr.mxu0 0.0
    %86 = vmatpush2.msra.mxu0 0.0
    %87 = vmatprep.subr.mxu0 0.0
    %88 = vmatpush2.msra.mxu0 0.0
    %89 = vmatprep.subr.mxu0 0.0
    %90 = vmatpush2.msra.mxu0 0.0
    %91 = vmatprep.subr.mxu0 0.0
    %92 = vmatpush2.msra.mxu0 0.0
    %93 = vmatprep.subr.mxu0 0.0
    %94 = vmatpush2.msra.mxu0 0.0
    %95 = vmatprep.subr.mxu0 0.0
    %96 = vmatpush2.msra.mxu0 0.0
    %97 = vmatprep.subr.mxu0 0.0
    %98 = vmatpush2.msra.mxu0 0.0
    %99 = vmatprep.subr.mxu0 0.0
    %100 = vmatpush2.msra.mxu0 0.0
    %101 = vmatprep.mubr.f32.mxu0 0.0
    %102 = vmatmul.mubr.f32.gmra.mxu0 %v35
    %v103 = vpop.f32.mrf.mxu0
    %v104 = vadd.f32 %v31, %v103
    %v105 = vpop.f32.mrf.mxu0
    %106 = vdwg.mxu0
    %v107 = vmax.f32 %v104, 0.0
    %v108 = vld [vmem:[%s3] sm:$0xff]
    %v109 = vld [vmem:[%s3 + $0x8] sm:$0xff]
    %v110 = vld [vmem:[%s3 + $0x10] sm:$0xff]
    %v111 = vld [vmem:[%s3 + $0x18] sm:$0xff]
    %v112 = vld [vmem:[%s3 + $0x20] sm:$0xff]
    %v113 = vld [vmem:[%s3 + $0x28] sm:$0xff]
    %v114 = vld [vmem:[%s3 + $0x30] sm:$0xff]
    %v115 = vld [vmem:[%s3 + $0x38] sm:$0xff]
    %v116 = vld [vmem:[%s3 + $0x40] sm:$0xff]
    %v117 = vld [vmem:[%s3 + $0x48] sm:$0xff]
    %v118 = vld [vmem:[%s3 + $0x50] sm:$0xff]
    %v119 = vld [vmem:[%s3 + $0x58] sm:$0xff]
    %v120 = vld [vmem:[%s3 + $0x60] sm:$0xff]
    %v121 = vld [vmem:[%s3 + $0x68] sm:$0xff]
    %v122 = vld [vmem:[%s3 + $0x70] sm:$0xff]
    %v123 = vld [vmem:[%s3 + $0x78] sm:$0xff]
    %v124 = vld [vmem:[%s4] sm:$0x1]
    %v126 = vlaneseq
    %v127 = vshrl.u32 %v126, 7
    %v128 = vsub.s32 0, %v127
    %v129 = vrot.slane %v124, %v128
    %131 = vmatprep.subr.mxu0 0.0
    %132 = vmatpush1.msra.mxu0 %v123
    %133 = vmatprep.subr.mxu0 0.0
    %134 = vmatpush1.msra.mxu0 %v122
    %135 = vmatprep.subr.mxu0 0.0
    %136 = vmatpush1.msra.mxu0 %v121
    %137 = vmatprep.subr.mxu0 0.0
    %138 = vmatpush1.msra.mxu0 %v120
    %139 = vmatprep.subr.mxu0 0.0
    %140 = vmatpush1.msra.mxu0 %v119
    %141 = vmatprep.subr.mxu0 0.0
    %142 = vmatpush1.msra.mxu0 %v118
    %143 = vmatprep.subr.mxu0 0.0
    %144 = vmatpush1.msra.mxu0 %v117
    %145 = vmatprep.subr.mxu0 0.0
    %146 = vmatpush1.msra.mxu0 %v116
    %147 = vmatprep.subr.mxu0 0.0
    %148 = vmatpush1.msra.mxu0 %v115
    %149 = vmatprep.subr.mxu0 0.0
    %150 = vmatpush1.msra.mxu0 %v114
    %151 = vmatprep.subr.mxu0 0.0
    %152 = vmatpush1.msra.mxu0 %v113
    %153 = vmatprep.subr.mxu0 0.0
    %154 = vmatpush1.msra.mxu0 %v112
    %155 = vmatprep.subr.mxu0 0.0
    %156 = vmatpush1.msra.mxu0 %v111
    %157 = vmatprep.subr.mxu0 0.0
    %158 = vmatpush1.msra.mxu0 %v110
    %159 = vmatprep.subr.mxu0 0.0
    %160 = vmatpush1.msra.mxu0 %v109
    %161 = vmatprep.subr.mxu0 0.0
    %162 = vmatpush1.msra.mxu0 %v108
    %163 = vmatprep.subr.mxu0 0.0
    %164 = vmatpush2.msra.mxu0 0.0
    %165 = vmatprep.subr.mxu0 0.0
    %166 = vmatpush2.msra.mxu0 0.0
    %167 = vmatprep.subr.mxu0 0.0
    %168 = vmatpush2.msra.mxu0 0.0
    %169 = vmatprep.subr.mxu0 0.0
    %170 = vmatpush2.msra.mxu0 0.0
    %171 = vmatprep.subr.mxu0 0.0
    %172 = vmatpush2.msra.mxu0 0.0
    %173 = vmatprep.subr.mxu0 0.0
    %174 = vmatpush2.msra.mxu0 0.0
    %175 = vmatprep.subr.mxu0 0.0
    %176 = vmatpush2.msra.mxu0 0.0
    %177 = vmatprep.subr.mxu0 0.0
    %178 = vmatpush2.msra.mxu0 0.0
    %179 = vmatprep.subr.mxu0 0.0
    %180 = vmatpush2.msra.mxu0 0.0
    %181 = vmatprep.subr.mxu0 0.0
    %182 = vmatpush2.msra.mxu0 0.0
    %183 = vmatprep.subr.mxu0 0.0
    %184 = vmatpush2.msra.mxu0 0.0
    %185 = vmatprep.subr.mxu0 0.0
    %186 = vmatpush2.msra.mxu0 0.0
    %187 = vmatprep.subr.mxu0 0.0
    %188 = vmatpush2.msra.mxu0 0.0
    %189 = vmatprep.subr.mxu0 0.0
    %190 = vmatpush2.msra.mxu0 0.0
    %191 = vmatprep.subr.mxu0 0.0
    %192 = vmatpush2.msra.mxu0 0.0
    %193 = vmatprep.subr.mxu0 0.0
    %194 = vmatpush2.msra.mxu0 0.0
    %195 = vmatprep.mubr.f32.mxu0 0.0
    %196 = vmatmul.mubr.f32.gmra.mxu0 %v107
    %v197 = vpop.f32.mrf.mxu0
    %v198 = vadd.f32 %v129, %v197
    %v199 = vpop.f32.mrf.mxu0
    %200 = vdwg.mxu0
    %v201 = vmul.f32 %v198, %v198
    %vm202 = vcmask 130048
    %v203 = vsel %vm202, %v201, 0.0
    %204 = vadd.xlane.f32.xlu0 %v203
    %v205 = vpop.xlane.xlu0 %204
    %v206 = vmax.f32 %v205, 1e-24
    %v207 = vrsqrt.pop %v206
    %v208 = vmul.f32 %v198, %v207
    %209 = vst.msk [vmem:[#allocation2] sm:$0xff] %vm202, %v208
    // Predicated region
    $region22: #{tpu_custom_call.1} parent=1 // pred_check
      _
    $region23: #{tpu_custom_call.1} parent=1 // pred_check_branch
      %211 = sbr.rel (0) target = $region25
    $region24: #{tpu_custom_call.1} parent=1 // pred_region
      %s213 = ssub.s32 128, 128
      %214 = vsyncadd [#allocation3], %s213
      %s216 = sshll.u32 [#allocation2], 4
      %s217 = int_to_ptr.vmem [resolvable:$true] %s216
      %219 = dma.vmem_to_hbm [thread:$0]  %s217, 128, %s5, [#allocation3]
    $region25: #{tpu_custom_call.1} parent=1 // pred_fallthru
      _
    // Predicated region
    $region26: #{tpu_custom_call.1} parent=1 // pred_check
      _
    $region27: #{tpu_custom_call.1} parent=1 // pred_check_branch
      %221 = sbr.rel (0) target = $region29
    $region28: #{tpu_custom_call.1} parent=1 // pred_region
      %222 = dma.done [#allocation3], 128
    $region29: #{tpu_custom_call.1} parent=1 // pred_fallthru
      _
    %223 = vsyncpa [#allocation3], 1

</llo_original>
